<compile_context>
chip_gen: v7x
topology: tpu7x:2x2x1
jax: 0.10.0
libtpu: 0.0.40
codegen_flags: <defaults>
</compile_context>

<pallas_src>
import functools

import jax
import jax.numpy as jnp
from jax import lax
from jax.experimental import pallas as pl
from jax.experimental.pallas import tpu as pltpu


def _fast_recip(x):
    # One EUP vrcp pass + one Newton refinement on the (free) VPU slots -> ~1 ulp of 1/x.
    r = pl.reciprocal(x, approx=True)
    return r * (2.0 - x * r)


def _reco_kernel(coords_ref, params_ref, out_ref, *, epsilon, chunk, unroll):
    # coords_ref: [3, TV]      voxel (x, y, z) coordinates for this voxel tile (f32)
    # params_ref: [5, B, Tp]   rows 0-2: slice coords; row 3: mask bias (0 valid / -1e30 pad);
    #                          row 4: per-slice mean pixel intensity (pixel mean hoisted)
    # out_ref   : [B, TV]      reconstructed voxel values for this tile
    B, TV = out_ref.shape
    n_chunks = TV // chunk

    # Tiny per-slice operands, loaded once per tile (outside the chunk loop).
    scx = params_ref[0][:, :, None]          # [B, Tp, 1]
    scy = params_ref[1][:, :, None]
    scz = params_ref[2][:, :, None]
    bias = params_ref[3][:, :, None]         # 0 for real slices, -1e30 for T padding
    mi = params_ref[4][:, :, None]
    eps2 = jnp.float32(epsilon) * jnp.float32(epsilon)

    def body(c, carry):
        off = pl.multiple_of(c * chunk, chunk)
        xc = coords_ref[0, pl.ds(off, chunk)][None, None, :]     # [1, 1, chunk]
        yc = coords_ref[1, pl.ds(off, chunk)][None, None, :]
        zc = coords_ref[2, pl.ds(off, chunk)][None, None, :]

        dx = xc - scx
        dy = yc - scy
        dz = zc - scz
        d2 = dx * dx + dy * dy + dz * dz + eps2                  # [B, Tp, chunk]

        # r = 1/(dist + eps) fused as rsqrt(d^2 + eps^2): one EUP pass instead of sqrt + rcp
        # (identical at d = 0, ~eps/d^2 absolute difference elsewhere).  One Newton step on
        # the VPU keeps the rsqrt near-exact since it feeds exp().
        q = lax.rsqrt(d2)
        q = q * (1.5 - 0.5 * d2 * q * q)
        r = q + bias                                             # padded slices -> ~-1e30

        # Max-over-T subtraction keeps exp finite even for (near-)coincident voxel/slice
        # positions (the reference overflows to Inf/NaN there); exact after normalization.
        m = jnp.max(r, axis=1, keepdims=True)                    # [B, 1, chunk]  (XLU)
        e = jnp.exp(r - m)                                       # padded slices underflow to 0

        # Folded normalization: one reciprocal per voxel.  den >= 1 by construction
        # (the max element contributes exp(0) = 1).
        num = jnp.sum(e * mi, axis=1)                            # [B, chunk]
        den = jnp.sum(e, axis=1)
        out_ref[:, pl.ds(off, chunk)] = num * _fast_recip(den)
        return carry

    lax.fori_loop(0, n_chunks, body, 0, unroll=unroll)


def differentiable_reconstruction(slices, transforms, volume_size,
                                  epsilon=1e-6, slice_indices=None,
                                  voxel_tile=4096):
    """Pallas equivalent of DifferentiableReconstruction.forward (fp32).

    slices:     [B, T, C, H, W] with C == 1 (required by the reference reshape/matmul)
    transforms: [B, T, D], D >= 3
    returns:    [B, 1, vol_x, vol_y, vol_z]
    """
    assert transforms.ndim == 3 and transforms.shape[2] >= 3
    B, T, C, H, W = slices.shape
    assert C == 1, "reference module's squeeze(2)/matmul requires channels == 1"
    vx, vy, vz = volume_size
    V = vx * vy * vz

    if slice_indices is None:
        slice_indices = jnp.broadcast_to(
            jnp.arange(T, dtype=jnp.int32)[None, :], (B, T))

    # ---------------- glue (plain JAX, outside the kernel) ----------------
    # Pixel mean hoisted BEFORE the gather: mean_p(gather_T(I)) == gather_T(mean_p(I)), so
    # the [B,T,C,H,W] stack is read once and the gathered full-resolution copy is gone.
    mean_all = jnp.mean(slices.astype(jnp.float32).reshape(B, T, -1), axis=-1)   # [B, T]
    mean_inten = jnp.take_along_axis(mean_all, slice_indices, axis=1)            # [B, T]

    # Only the translation columns are needed; gather [B, T, 3], not [B, T, D].
    sel_tr = jnp.take_along_axis(
        transforms[..., :3].astype(jnp.float32),
        jnp.broadcast_to(slice_indices[:, :, None], (B, T, 3)), axis=1)
    slice_coords = jnp.transpose(sel_tr, (2, 0, 1))                              # [3, B, T]

    # Pad T to a multiple of 8 so [B, Tp, chunk] vregs have dense sublanes; padded slices
    # get a -1e30 bias so exp() underflows them to exactly 0 in both sums.
    Tp = ((T + 7) // 8) * 8
    pad_t = Tp - T

    def _pad_T(a, fill=0.0):
        return jnp.pad(a, ((0, 0), (0, pad_t)), constant_values=fill) if pad_t else a

    params = jnp.stack([
        _pad_T(slice_coords[0]), _pad_T(slice_coords[1]), _pad_T(slice_coords[2]),
        _pad_T(jnp.zeros((B, T), jnp.float32), fill=-1e30),      # mask bias
        _pad_T(mean_inten),
    ], axis=0)                                                   # [5, B, Tp]

    # ---------------- tile-size selection (VMEM-budget driven) ----------------
    try:
        vmem_bytes = int(pltpu.get_tpu_info().vmem_capacity_bytes)
    except Exception:
        vmem_bytes = 64 << 20      # v7x per-TensorCore floor; conservative everywhere

    # Inner lane-chunk: the dx->exp chain keeps ~8 live f32 slabs of [B, Tp, chunk];
    # keep that within a few MiB so stores/spills stay off the 1-wide vst slot.
    chunk = 512
    chunk_budget = min(vmem_bytes // 8, 8 << 20)
    while chunk > 128 and 8 * B * Tp * chunk * 4 > chunk_budget:
        chunk //= 2

    # Voxel tile TV: as large as the pipelined coords/out blocks allow (per-grid-step
    # overhead ~0.35 us), lane-dense (multiple of 128).
    io_per_lane = 2 * (3 * 4) + 2 * (B * 4)          # double-buffered coords + out blocks
    tv_cap_budget = max(128, (min(vmem_bytes // 4, 16 << 20) // io_per_lane) // 128 * 128)
    TV_cap = max(128, min((int(voxel_tile) // 128) * 128, tv_cap_budget))

    if V % 128 == 0:
        # Pick TV dividing V (no padding, no post-slice copy); prefer an even tile count so
        # v7x's two TensorCores stay balanced (essentially free on single-TC v5e/v6e).
        cands = [t for t in range(128, min(TV_cap, V) + 1, 128) if V % t == 0]
        even = [t for t in cands if (V // t) % 2 == 0]
        TV = max(even) if even else max(cands)
        n_tiles = V // TV
        V_pad = V
    else:
        # Rare non-128-multiple volumes: pad to a lane-dense tile and slice the tail off.
        TV = min(TV_cap, ((V + 127) // 128) * 128)
        n_tiles = int(pl.cdiv(V, TV))
        V_pad = n_tiles * TV

    chunk = min(chunk, TV)
    while TV % chunk != 0:
        chunk -= 128
    n_chunks = TV // chunk
    unroll = True if n_chunks <= 8 else 8

    # Voxel coordinates precomputed once in the wrapper ([3, V_pad] f32; ~48 KiB/tile DMA,
    # fully hidden by the pipeline) -- no int div/mod on the kernel's hot path.
    flat = jnp.arange(V_pad, dtype=jnp.int32)
    coords = jnp.stack([
        (flat // (vy * vz)).astype(jnp.float32),
        ((flat // vz) % vy).astype(jnp.float32),
        (flat % vz).astype(jnp.float32),
    ], axis=0)                                                   # [3, V_pad]
    # NOTE: entries with flat >= V are out-of-volume padding; they are computed but sliced
    # off below -- do not reuse the padded output region.

    # TODO(synk): torch.cuda.amp.autocast would run the (now algebraically removed) matmul
    # in fp16; the kernel stays fp32 throughout.
    kernel = functools.partial(_reco_kernel, epsilon=float(epsilon),
                               chunk=int(chunk), unroll=unroll)

    out = pl.pallas_call(
        kernel,
        out_shape=jax.ShapeDtypeStruct((B, V_pad), jnp.float32),
        grid_spec=pl.GridSpec(
            grid=(n_tiles,),
            in_specs=[
                pl.BlockSpec((3, TV), lambda i: (0, i)),         # voxel coords tile
                pl.BlockSpec((5, B, Tp), lambda i: (0, 0, 0)),   # slice params (tiny, resident)
            ],
            out_specs=pl.BlockSpec((B, TV), lambda i: (0, i)),   # lane-dense output tile
        ),
        compiler_params=pltpu.CompilerParams(
            dimension_semantics=("parallel",),
            vmem_limit_bytes=int(min(vmem_bytes, 128 << 20) // 2),
        ),
    )(coords, params)

    if V_pad != V:
        out = out[:, :V]
    return out.reshape(B, 1, vx, vy, vz)


def _reference(slices, transforms, volume_size, epsilon=1e-6):
    """Pure-JAX reference mirroring the PyTorch forward (slice_indices=None)."""
    B, T, C, H, W = slices.shape
    vx, vy, vz = volume_size
    V = vx * vy * vz
    slice_coords = transforms[..., :3].astype(jnp.float32)               # [B, T, 3]
    intensity = slices.reshape(B, T * C, H * W).astype(jnp.float32)      # [B, T, HW]
    gx, gy, gz = jnp.meshgrid(jnp.arange(vx), jnp.arange(vy), jnp.arange(vz),
                              indexing='ij')
    coords = jnp.stack([gx, gy, gz], axis=-1).reshape(V, 3).astype(jnp.float32)
    diff = coords[None, None, :, :] - slice_coords[:, :, None, :]        # [B, T, V, 3]
    dist = jnp.sqrt(jnp.sum(diff * diff, axis=-1))                       # [B, T, V]
    w = jnp.exp(1.0 / (dist + epsilon))
    w = w / jnp.sum(w, axis=1, keepdims=True)
    weighted = jnp.einsum('btv,btp->bvp', w, intensity,
                          precision=lax.Precision.HIGHEST)               # [B, V, HW]
    recon = jnp.mean(weighted, axis=2)                                   # [B, V]
    return recon.reshape(B, 1, vx, vy, vz)


if __name__ == "__main__":
    B, T, C, H, W = 2, 8, 1, 16, 16
    volume_size = (8, 8, 8)

    key = jax.random.PRNGKey(0)
    k1, k2, k3 = jax.random.split(key, 3)
    slices = jax.random.normal(k1, (B, T, C, H, W), dtype=jnp.float32)
    # Slice translations at voxel-cell centres (+/- 0.2 jitter): every voxel stays >= ~0.5
    # away from every slice coordinate, so the kernel's rsqrt(d^2 + eps^2) and the
    # reference's 1/(d + eps) agree far inside the tolerance (difference ~ eps/d^2), and
    # the reference never hits its exp(1/eps) overflow.
    centres = jnp.floor(jax.random.uniform(k2, (B, T, 3), dtype=jnp.float32) * 8.0) + 0.5
    jitter = (jax.random.uniform(k3, (B, T, 3), dtype=jnp.float32) - 0.5) * 0.4
    transforms = jnp.concatenate(
        [centres + jitter, jnp.zeros((B, T, 3), jnp.float32)], axis=-1)   # [B, T, 6]

    vol = differentiable_reconstruction(slices, transforms, volume_size)
    vol = jax.block_until_ready(vol)
    assert vol.shape == (B, 1) + volume_size

    vol_ref = _reference(slices, transforms, volume_size)
    assert bool(jnp.all(jnp.isfinite(vol))), "non-finite output"
    assert jnp.allclose(vol, vol_ref, rtol=2e-4, atol=2e-5), "mismatch vs reference"

    print("KERNEL_OK")
</pallas_src>

<mosaic_0001>
module attributes {stable_mosaic.version = 11 : i64} {
  func.func @_reco_kernel(%arg0: i32, %arg1: memref<3x256xf32, #tpu.memory_space<vmem>>, %arg2: memref<5x2x8xf32, #tpu.memory_space<vmem>>, %arg3: memref<2x256xf32, #tpu.memory_space<vmem>>) attributes {dimension_semantics = [#tpu.dimension_semantics<parallel>], iteration_bounds = array<i64: 2>, scalar_prefetch = 0 : i64, scratch_operands = 0 : i64, tpu.core_type = #tpu.core_type<tc>, window_params = [{transform_indices = @transform_0, window_bounds = array<i64: 3, 256>}, {pipeline_mode = #tpu.pipeline_mode<synchronous>, transform_indices = @transform_1, window_bounds = array<i64: 5, 2, 8>}, {transform_indices = @transform_2, window_bounds = array<i64: 2, 256>}]} {
    %c0 = arith.constant 0 : index
    %c0_0 = arith.constant 0 : index
    %c0_1 = arith.constant 0 : index
    %0 = vector.load %arg2[%c0, %c0_0, %c0_1] : memref<5x2x8xf32, #tpu.memory_space<vmem>>, vector<1x2x8xf32>
    %1 = vector.shape_cast %0 : vector<1x2x8xf32> to vector<2x8xf32>
    %2 = vector.shape_cast %1 : vector<2x8xf32> to vector<2x8x1xf32>
    %c1 = arith.constant 1 : index
    %c0_2 = arith.constant 0 : index
    %c0_3 = arith.constant 0 : index
    %3 = vector.load %arg2[%c1, %c0_2, %c0_3] : memref<5x2x8xf32, #tpu.memory_space<vmem>>, vector<1x2x8xf32>
    %4 = vector.shape_cast %3 : vector<1x2x8xf32> to vector<2x8xf32>
    %5 = vector.shape_cast %4 : vector<2x8xf32> to vector<2x8x1xf32>
    %c2 = arith.constant 2 : index
    %c0_4 = arith.constant 0 : index
    %c0_5 = arith.constant 0 : index
    %6 = vector.load %arg2[%c2, %c0_4, %c0_5] : memref<5x2x8xf32, #tpu.memory_space<vmem>>, vector<1x2x8xf32>
    %7 = vector.shape_cast %6 : vector<1x2x8xf32> to vector<2x8xf32>
    %8 = vector.shape_cast %7 : vector<2x8xf32> to vector<2x8x1xf32>
    %c3 = arith.constant 3 : index
    %c0_6 = arith.constant 0 : index
    %c0_7 = arith.constant 0 : index
    %9 = vector.load %arg2[%c3, %c0_6, %c0_7] : memref<5x2x8xf32, #tpu.memory_space<vmem>>, vector<1x2x8xf32>
    %10 = vector.shape_cast %9 : vector<1x2x8xf32> to vector<2x8xf32>
    %11 = vector.shape_cast %10 : vector<2x8xf32> to vector<2x8x1xf32>
    %c4 = arith.constant 4 : index
    %c0_8 = arith.constant 0 : index
    %c0_9 = arith.constant 0 : index
    %12 = vector.load %arg2[%c4, %c0_8, %c0_9] : memref<5x2x8xf32, #tpu.memory_space<vmem>>, vector<1x2x8xf32>
    %13 = vector.shape_cast %12 : vector<1x2x8xf32> to vector<2x8xf32>
    %14 = vector.shape_cast %13 : vector<2x8xf32> to vector<2x8x1xf32>
    %cst = arith.constant 9.99999997E-7 : f32
    %cst_10 = arith.constant 9.99999997E-7 : f32
    %15 = arith.mulf %cst, %cst_10 : f32
    %c0_i32 = arith.constant 0 : i32
    %c256_i32 = arith.constant 256 : i32
    %16 = arith.muli %c0_i32, %c256_i32 : i32
    %17 = tpu.assume_multiple %16, 256 : i32
    %c0_11 = arith.constant 0 : index
    %18 = arith.index_cast %17 : i32 to index
    %19 = vector.load %arg1[%c0_11, %18] : memref<3x256xf32, #tpu.memory_space<vmem>>, vector<1x256xf32>
    %20 = vector.shape_cast %19 : vector<1x256xf32> to vector<256xf32>
    %21 = vector.shape_cast %20 : vector<256xf32> to vector<1x1x256xf32>
    %c1_12 = arith.constant 1 : index
    %22 = arith.index_cast %17 : i32 to index
    %23 = vector.load %arg1[%c1_12, %22] : memref<3x256xf32, #tpu.memory_space<vmem>>, vector<1x256xf32>
    %24 = vector.shape_cast %23 : vector<1x256xf32> to vector<256xf32>
    %25 = vector.shape_cast %24 : vector<256xf32> to vector<1x1x256xf32>
    %c2_13 = arith.constant 2 : index
    %26 = arith.index_cast %17 : i32 to index
    %27 = vector.load %arg1[%c2_13, %26] : memref<3x256xf32, #tpu.memory_space<vmem>>, vector<1x256xf32>
    %28 = vector.shape_cast %27 : vector<1x256xf32> to vector<256xf32>
    %29 = vector.shape_cast %28 : vector<256xf32> to vector<1x1x256xf32>
    %30 = vector.broadcast %21 : vector<1x1x256xf32> to vector<2x8x256xf32>
    %31 = vector.broadcast %2 : vector<2x8x1xf32> to vector<2x8x256xf32>
    %32 = arith.subf %30, %31 : vector<2x8x256xf32>
    %33 = vector.broadcast %25 : vector<1x1x256xf32> to vector<2x8x256xf32>
    %34 = vector.broadcast %5 : vector<2x8x1xf32> to vector<2x8x256xf32>
    %35 = arith.subf %33, %34 : vector<2x8x256xf32>
    %36 = vector.broadcast %29 : vector<1x1x256xf32> to vector<2x8x256xf32>
    %37 = vector.broadcast %8 : vector<2x8x1xf32> to vector<2x8x256xf32>
    %38 = arith.subf %36, %37 : vector<2x8x256xf32>
    %39 = arith.mulf %32, %32 : vector<2x8x256xf32>
    %40 = arith.mulf %35, %35 : vector<2x8x256xf32>
    %41 = arith.addf %39, %40 : vector<2x8x256xf32>
    %42 = arith.mulf %38, %38 : vector<2x8x256xf32>
    %43 = arith.addf %41, %42 : vector<2x8x256xf32>
    %44 = vector.broadcast %15 : f32 to vector<2x8x256xf32>
    %45 = arith.addf %43, %44 : vector<2x8x256xf32>
    %46 = math.rsqrt %45 : vector<2x8x256xf32>
    %cst_14 = arith.constant 5.000000e-01 : f32
    %47 = vector.broadcast %cst_14 : f32 to vector<2x8x256xf32>
    %48 = arith.mulf %47, %45 : vector<2x8x256xf32>
    %49 = arith.mulf %48, %46 : vector<2x8x256xf32>
    %50 = arith.mulf %49, %46 : vector<2x8x256xf32>
    %cst_15 = arith.constant 1.500000e+00 : f32
    %51 = vector.broadcast %cst_15 : f32 to vector<2x8x256xf32>
    %52 = arith.subf %51, %50 : vector<2x8x256xf32>
    %53 = arith.mulf %46, %52 : vector<2x8x256xf32>
    %54 = vector.broadcast %11 : vector<2x8x1xf32> to vector<2x8x256xf32>
    %55 = arith.addf %53, %54 : vector<2x8x256xf32>
    %cst_16 = arith.constant dense<0xFF800000> : vector<2x256xf32>
    %56 = vector.multi_reduction <maximumf>, %55, %cst_16 [1] : vector<2x8x256xf32> to vector<2x256xf32>
    %57 = vector.shape_cast %56 : vector<2x256xf32> to vector<2x1x256xf32>
    %58 = vector.broadcast %57 : vector<2x1x256xf32> to vector<2x8x256xf32>
    %59 = arith.subf %55, %58 : vector<2x8x256xf32>
    %60 = math.exp %59 : vector<2x8x256xf32>
    %61 = vector.broadcast %14 : vector<2x8x1xf32> to vector<2x8x256xf32>
    %62 = arith.mulf %60, %61 : vector<2x8x256xf32>
    %cst_17 = arith.constant dense<0.000000e+00> : vector<2x256xf32>
    %63 = vector.multi_reduction <add>, %62, %cst_17 [1] : vector<2x8x256xf32> to vector<2x256xf32>
    %cst_18 = arith.constant dense<0.000000e+00> : vector<2x256xf32>
    %64 = vector.multi_reduction <add>, %60, %cst_18 [1] : vector<2x8x256xf32> to vector<2x256xf32>
    %65 = tpu.reciprocal %64 {approx = true} : vector<2x256xf32> -> vector<2x256xf32>
    %66 = arith.mulf %64, %65 : vector<2x256xf32>
    %cst_19 = arith.constant 2.000000e+00 : f32
    %67 = vector.broadcast %cst_19 : f32 to vector<2x256xf32>
    %68 = arith.subf %67, %66 : vector<2x256xf32>
    %69 = arith.mulf %65, %68 : vector<2x256xf32>
    %70 = arith.mulf %63, %69 : vector<2x256xf32>
    %c0_20 = arith.constant 0 : index
    %71 = arith.index_cast %17 : i32 to index
    %72 = vector.load %arg3[%c0_20, %71] : memref<2x256xf32, #tpu.memory_space<vmem>>, vector<2x256xf32>
    tpu.vector_store %arg3[%c0_20, %71], %70 {strides = array<i32>} : memref<2x256xf32, #tpu.memory_space<vmem>>, vector<2x256xf32>,
    %c1_i32 = arith.constant 1 : i32
    return
  }
  func.func @transform_0(%arg0: i32) -> (i32, i32) {
    %c0_i32 = arith.constant 0 : i32
    %c0_i32_0 = arith.constant 0 : i32
    return %c0_i32, %arg0 : i32, i32
  }
  func.func @transform_1(%arg0: i32) -> (i32, i32, i32) {
    %c0_i32 = arith.constant 0 : i32
    %c0_i32_0 = arith.constant 0 : i32
    %c0_i32_1 = arith.constant 0 : i32
    %c0_i32_2 = arith.constant 0 : i32
    return %c0_i32, %c0_i32_0, %c0_i32_1 : i32, i32, i32
  }
  func.func @transform_2(%arg0: i32) -> (i32, i32) {
    %c0_i32 = arith.constant 0 : i32
    %c0_i32_0 = arith.constant 0 : i32
    return %c0_i32, %arg0 : i32, i32
  }
}

</mosaic_0001>

<llo_original>
// kernel: tpu_custom_call.1
$region0: #{tpu_custom_call.1}
  #allocation0 [shape = 'u32[]', space=smem, size = 0x4, offset = 0x4, fixed_abs, tag = 'smem constant byte address 0x4 - core index']
  #allocation1 [shape = 'u32[144,128]{1,0:T(1,128)}', space=vmem, size = 0x12000, scoped, tag = 'internal scratch']
  %s0 = inlined_call_operand.hbm [shape: f32[3,512], index: 0, kind: input, shape index: {}]
  %s1 = inlined_call_operand.hbm [shape: f32[5,2,8], index: 1, kind: input, shape index: {}]
  %s2 = inlined_call_operand.hbm [shape: f32[2,512], index: 2, kind: output, shape index: {}]
  %s3 = sld [smem:[#allocation0]]
  $region49: #{tpu_custom_call.1} parent=0
    _
  %s5 = ssub.s32 1, %s3
  %s6 = scalar_select 0, %s5, %s3
  $region1: #{tpu_custom_call.1} parent=0
    #allocation2 [shape = 'u8[8192]{0}', space=vmem, size = 0x2000, scoped, tag = 'input window, operand 0']
    #allocation3 [shape = 's32[2]{0}', space=sflag, size = 0x8, scoped, tag = 'scoped memory for tpu_custom_call.1']
    #allocation4 [shape = 's32[2]{0}', space=sflag, size = 0x8, scoped, tag = 'scoped memory for tpu_custom_call.1']
    #allocation5 [shape = 'u8[5120]{0}', space=vmem, size = 0x1400, scoped, tag = 'input window, operand 1, single buffered']
    #allocation6 [shape = 's32[1]{0}', space=sflag, size = 0x4, scoped, tag = 'scoped memory for tpu_custom_call.1']
    #allocation7 [shape = 'u8[4096]{0}', space=vmem, size = 0x1000, scoped, tag = 'output window, operand 0']
    %7 = vsyncpa [#allocation3], 0
    %s8 = scalar_lea.sflag [#allocation3], 1
    %9 = vsyncpa %s8, 0
    %10 = vsyncpa [#allocation6], 0
    %11 = vsyncpa [#allocation4], 0
    %s12 = scalar_lea.sflag [#allocation4], 1
    %13 = vsyncpa %s12, 0
    loop: start=0, step=1, limit=4
    $region2: #{tpu_custom_call.1} parent=1 // loop_pre_header
      _
    $region3: #{tpu_custom_call.1} parent=1 // loop_header
      %s15 = sphi 0, %s19
      %p16 = scmp.ge.s32.totalorder %s15, 4
      %s25 = sphi 0, %s27
      %s28 = sphi 0, %s25
      %s29 = sphi 0, %s28
      %s45 = sphi 0, %s29
      %s49 = sphi 0, %s49
      %s51 = sphi 0, %s49
      %s52 = sphi 0, %s51
      %s66 = sphi 0, %s52
      %s72 = sphi 0, %s74
      %s75 = sphi 0, %s72
      %s76 = sphi 0, %s75
      %s92 = sphi 0, %s76
    $region4: #{tpu_custom_call.1} parent=1 // loop_header_branch
      %18 = sbr.rel (%p16) target = $region8
    $region5: #{tpu_custom_call.1} parent=1 // loop_body
      %s20 = ssub.s32 %s15, 1
      %s21 = ssub.s32 %s15, 2
      %s22 = sadd.s32 %s15, 1
      %s23 = ssub.s32 %s15, %s22
      %p24 = scmp.eq.s32.totalorder %s23, 0
      %s26 = sadd.s32 %s25, 1
      %s27 = scalar_select %p24, %s25, %s26
      %p30 = pneg %p24
      %p31 = scmp.eq.s32.totalorder %s15, 1
      %p32 = por %p30, %p31
      %p33 = scmp.ne.s32.totalorder %s25, %s28
      %p34 = scmp.eq.s32.totalorder %s15, 0
      %p35 = por %p33, %p34
      %p36 = scmp.ne.s32.totalorder %s25, %s28
      %p37 = scmp.eq.s32.totalorder %s20, 1
      %p38 = por %p36, %p37
      %p39 = scmp.ne.s32.totalorder %s28, %s29
      %p40 = scmp.eq.s32.totalorder %s20, 0
      %p41 = por %p39, %p40
      %p42 = scmp.ne.s32.totalorder %s28, %s29
      %p43 = scmp.eq.s32.totalorder %s21, 1
      %p44 = por %p42, %p43
      %p46 = scmp.ne.s32.totalorder %s29, %s45
      %p47 = scmp.eq.s32.totalorder %s21, 0
      %p48 = por %p46, %p47
      %s50 = sadd.s32 %s49, 1
      %p53 = scmp.eq.s32.totalorder %s15, 1
      %p54 = scmp.ne.s32.totalorder %s49, %s51
      %p55 = scmp.eq.s32.totalorder %s15, 0
      %p56 = por %p54, %p55
      %p57 = scmp.ne.s32.totalorder %s49, %s51
      %p58 = scmp.eq.s32.totalorder %s20, 1
      %p59 = por %p57, %p58
      %p60 = scmp.ne.s32.totalorder %s51, %s52
      %p61 = scmp.eq.s32.totalorder %s20, 0
      %p62 = por %p60, %p61
      %p63 = scmp.ne.s32.totalorder %s51, %s52
      %p64 = scmp.eq.s32.totalorder %s21, 1
      %p65 = por %p63, %p64
      %p67 = scmp.ne.s32.totalorder %s52, %s66
      %p68 = scmp.eq.s32.totalorder %s21, 0
      %p69 = por %p67, %p68
      %s70 = ssub.s32 %s15, %s22
      %p71 = scmp.eq.s32.totalorder %s70, 0
      %s73 = sadd.s32 %s72, 1
      %s74 = scalar_select %p71, %s72, %s73
      %p77 = pneg %p71
      %p78 = scmp.eq.s32.totalorder %s15, 1
      %p79 = por %p77, %p78
      %p80 = scmp.ne.s32.totalorder %s72, %s75
      %p81 = scmp.eq.s32.totalorder %s15, 0
      %p82 = por %p80, %p81
      %p83 = scmp.ne.s32.totalorder %s72, %s75
      %p84 = scmp.eq.s32.totalorder %s20, 1
      %p85 = por %p83, %p84
      %p86 = scmp.ne.s32.totalorder %s75, %s76
      %p87 = scmp.eq.s32.totalorder %s20, 0
      %p88 = por %p86, %p87
      %p89 = scmp.ne.s32.totalorder %s75, %s76
      %p90 = scmp.eq.s32.totalorder %s21, 1
      %p91 = por %p89, %p90
      %p93 = scmp.ne.s32.totalorder %s76, %s92
      %p94 = scmp.eq.s32.totalorder %s21, 0
      %p95 = por %p93, %p94
      %p96 = scmp.le.s32.totalorder 1, %s15
      %p97 = scmp.lt.s32.totalorder %s15, 3
      %p98 = pnand %p96, %p97
      %p99 = pneg %p98
      // Predicated region
      $region9: #{tpu_custom_call.1} parent=5 // pred_check
        _
      $region10: #{tpu_custom_call.1} parent=5 // pred_check_branch
        %101 = sbr.rel (%p98) target = $region12
      $region11: #{tpu_custom_call.1} parent=5 // pred_region
        %s102 = ssub.s32 %s15, 1
        // Predicated region
        $region13: #{tpu_custom_call.1} parent=11 // pred_check
          %p103 = pneg %p62
        $region14: #{tpu_custom_call.1} parent=11 // pred_check_branch
          %105 = sbr.rel (%p103) target = $region16
        $region15: #{tpu_custom_call.1} parent=11 // pred_region
          %s107 = ssub.s32 160, 160
          %108 = vsyncadd [#allocation6], %s107
          %s109 = sshll.u32 [#allocation5], 4
          %s110 = int_to_ptr.vmem [resolvable:$true] %s109
          %115 = dma.hbm_to_vmem [thread:$0]  %s1, 160, %s110, [#allocation6], 32, 32, 2
        $region16: #{tpu_custom_call.1} parent=11 // pred_fallthru
          _
      $region12: #{tpu_custom_call.1} parent=5 // pred_fallthru
        _
      %p116 = scmp.lt.s32.totalorder %s15, 2
      // Predicated region
      $region17: #{tpu_custom_call.1} parent=5 // pred_check
        %p117 = pneg %p116
      $region18: #{tpu_custom_call.1} parent=5 // pred_check_branch
        %119 = sbr.rel (%p117) target = $region20
      $region19: #{tpu_custom_call.1} parent=5 // pred_region
        // Predicated region
        $region21: #{tpu_custom_call.1} parent=19 // pred_check
          %p120 = pneg %p35
        $region22: #{tpu_custom_call.1} parent=19 // pred_check_branch
          %122 = sbr.rel (%p120) target = $region24
        $region23: #{tpu_custom_call.1} parent=19 // pred_region
          %s123 = sand.u32 %s25, 1
          %s124 = scalar_lea.sflag [#allocation3], %s123
          %s125 = sand.u32 %s25, 1
          %s126 = smul.addr %s125, 8
          %s127 = scalar_lea.vmem [#allocation2], %s126
          %s128 = smul.u32 2, %s15
          %s130 = ssub.s32 128, 128
          %131 = vsyncadd %s124, %s130
          %s132 = smul.addr %s128, 64
          %s133 = scalar_lea.hbm %s0, %s132
          %s135 = sshll.u32 %s127, 4
          %s136 = int_to_ptr.vmem [resolvable:$true] %s135
          %138 = dma.hbm_to_vmem [thread:$0]  %s133, 128, %s136, %s124
        $region24: #{tpu_custom_call.1} parent=19 // pred_fallthru
          _
      $region20: #{tpu_custom_call.1} parent=5 // pred_fallthru
        _
      %p139 = scmp.le.s32.totalorder 1, %s15
      %p140 = scmp.lt.s32.totalorder %s15, 3
      %p141 = pnand %p139, %p140
      %p142 = pneg %p141
      // Predicated region
      $region25: #{tpu_custom_call.1} parent=5 // pred_check
        _
      $region26: #{tpu_custom_call.1} parent=5 // pred_check_branch
        %144 = sbr.rel (%p141) target = $region28
      $region27: #{tpu_custom_call.1} parent=5 // pred_region
        %s145 = ssub.s32 %s15, 1
        %s146 = sand.u32 %s28, 1
        %s147 = scalar_lea.sflag [#allocation3], %s146
        %s148 = sand.u32 %s28, 1
        %s149 = smul.addr %s148, 8
        %s150 = scalar_lea.vmem [#allocation2], %s149
        // Predicated region
        $region29: #{tpu_custom_call.1} parent=27 // pred_check
          %p151 = pneg %p41
        $region30: #{tpu_custom_call.1} parent=27 // pred_check_branch
          %153 = sbr.rel (%p151) target = $region32
        $region31: #{tpu_custom_call.1} parent=27 // pred_region
          %154 = dma.done %s147, 128
        $region32: #{tpu_custom_call.1} parent=27 // pred_fallthru
          _
        // Predicated region
        $region33: #{tpu_custom_call.1} parent=27 // pred_check
          %p155 = pneg %p62
        $region34: #{tpu_custom_call.1} parent=27 // pred_check_branch
          %157 = sbr.rel (%p155) target = $region36
        $region35: #{tpu_custom_call.1} parent=27 // pred_region
          %158 = dma.done [#allocation6], 160
        $region36: #{tpu_custom_call.1} parent=27 // pred_fallthru
          _
        %s159 = sand.u32 %s28, 1
        %s160 = scalar_lea.sflag [#allocation3], %s159
        %s161 = sand.u32 %s28, 1
        %s162 = smul.addr %s161, 8
        %s163 = scalar_lea.vmem [#allocation2], %s162
        %p164 = pneg %p41
        %p165 = pneg %p38
        %p166 = pneg %p62
        %p167 = pneg %p59
        %p168 = pneg %p88
        %p169 = pneg %p85
        %s170 = sand.u32 %s75, 1
        %s171 = scalar_lea.sflag [#allocation4], %s170
        %s172 = sand.u32 %s75, 1
        %s173 = smul.addr %s172, 4
        %s174 = scalar_lea.vmem [#allocation7], %s173
        %s175 = smul.u32 2, %s20
        %s176 = smul.u32 2, %s20
        %v177 = vld [vmem:[#allocation5] sm:$0x3]
        %v178 = vlaneseq
        %v179 = vshrl.u32 %v178, 7
        %v180 = vsub.s32 0, %v179
        %v181 = vrot.slane %v177, %v180
        %183 = vbcast.lane.b32.xlu0 %v181, 256
        %v184 = vpop.permute.xlu0 %183
        %v185 = vlaneseq
        %v186 = vshrl.u32 %v185, 7
        %v187 = vsub.s32 1, %v186
        %v188 = vrot.slane %v177, %v187
        %190 = vbcast.lane.b32.xlu0 %v188, 256
        %v191 = vpop.permute.xlu0 %190
        %s192 = scalar_lea.vmem [#allocation5], 2
        %v193 = vld [vmem:[%s192] sm:$0x3]
        %v194 = vlaneseq
        %v195 = vshrl.u32 %v194, 7
        %v196 = vsub.s32 0, %v195
        %v197 = vrot.slane %v193, %v196
        %199 = vbcast.lane.b32.xlu0 %v197, 256
        %v200 = vpop.permute.xlu0 %199
        %v201 = vlaneseq
        %v202 = vshrl.u32 %v201, 7
        %v203 = vsub.s32 1, %v202
        %v204 = vrot.slane %v193, %v203
        %206 = vbcast.lane.b32.xlu0 %v204, 256
        %v207 = vpop.permute.xlu0 %206
        %s208 = scalar_lea.vmem [#allocation5], 4
        %v209 = vld [vmem:[%s208] sm:$0x3]
        %v210 = vlaneseq
        %v211 = vshrl.u32 %v210, 7
        %v212 = vsub.s32 0, %v211
        %v213 = vrot.slane %v209, %v212
        %215 = vbcast.lane.b32.xlu0 %v213, 256
        %v216 = vpop.permute.xlu0 %215
        %v217 = vlaneseq
        %v218 = vshrl.u32 %v217, 7
        %v219 = vsub.s32 1, %v218
        %v220 = vrot.slane %v209, %v219
        %222 = vbcast.lane.b32.xlu0 %v220, 256
        %v223 = vpop.permute.xlu0 %222
        %s224 = scalar_lea.vmem [#allocation5], 6
        %v225 = vld [vmem:[%s224] sm:$0x3]
        %v226 = vlaneseq
        %v227 = vshrl.u32 %v226, 7
        %v228 = vsub.s32 0, %v227
        %v229 = vrot.slane %v225, %v228
        %231 = vbcast.lane.b32.xlu0 %v229, 256
        %v232 = vpop.permute.xlu0 %231
        %v233 = vlaneseq
        %v234 = vshrl.u32 %v233, 7
        %v235 = vsub.s32 1, %v234
        %v236 = vrot.slane %v225, %v235
        %238 = vbcast.lane.b32.xlu0 %v236, 256
        %v239 = vpop.permute.xlu0 %238
        %s240 = scalar_lea.vmem [#allocation5], 8
        %v241 = vld [vmem:[%s240] sm:$0x3]
        %v242 = vlaneseq
        %v243 = vshrl.u32 %v242, 7
        %v244 = vsub.s32 0, %v243
        %v245 = vrot.slane %v241, %v244
        %247 = vbcast.lane.b32.xlu0 %v245, 256
        %v248 = vpop.permute.xlu0 %247
        %v249 = vlaneseq
        %v250 = vshrl.u32 %v249, 7
        %v251 = vsub.s32 1, %v250
        %v252 = vrot.slane %v241, %v251
        %254 = vbcast.lane.b32.xlu0 %v252, 256
        %v255 = vpop.permute.xlu0 %254
        %v256 = vld [vmem:[%s150] ss:$4 sm:$0x3]
        %s257 = scalar_lea.vmem %s150, 1 [#allocation2]
        %v258 = vld [vmem:[%s257] ss:$4 sm:$0x3]
        %s259 = scalar_lea.vmem %s150, 2 [#allocation2]
        %v260 = vld [vmem:[%s259] ss:$4 sm:$0x3]
        %v262 = vlaneseq
        %v263 = vshrl.u32 %v262, 7
        %v264 = vsub.s32 0, %v263
        %v265 = vrot.slane %v256, %v264
        %v266 = vlaneseq
        %v267 = vshrl.u32 %v266, 7
        %v268 = vsub.s32 1, %v267
        %v269 = vrot.slane %v256, %v268
        %v272 = vsub.f32 %v265, %v184
        %v273 = vsub.f32 %v269, %v184
        %v274 = vsub.f32 %v265, %v191
        %v275 = vsub.f32 %v269, %v191
        %v277 = vlaneseq
        %v278 = vshrl.u32 %v277, 7
        %v279 = vsub.s32 0, %v278
        %v280 = vrot.slane %v258, %v279
        %v281 = vlaneseq
        %v282 = vshrl.u32 %v281, 7
        %v283 = vsub.s32 1, %v282
        %v284 = vrot.slane %v258, %v283
        %v287 = vsub.f32 %v280, %v200
        %v288 = vsub.f32 %v284, %v200
        %v289 = vsub.f32 %v280, %v207
        %v290 = vsub.f32 %v284, %v207
        %v292 = vlaneseq
        %v293 = vshrl.u32 %v292, 7
        %v294 = vsub.s32 0, %v293
        %v295 = vrot.slane %v260, %v294
        %v296 = vlaneseq
        %v297 = vshrl.u32 %v296, 7
        %v298 = vsub.s32 1, %v297
        %v299 = vrot.slane %v260, %v298
        %v302 = vsub.f32 %v295, %v216
        %v303 = vsub.f32 %v299, %v216
        %v304 = vsub.f32 %v295, %v223
        %v305 = vsub.f32 %v299, %v223
        %v306 = vmul.f32 %v272, %v272
        %v307 = vmul.f32 %v273, %v273
        %v308 = vmul.f32 %v274, %v274
        %v309 = vmul.f32 %v275, %v275
        %v310 = vmul.f32 %v287, %v287
        %v311 = vmul.f32 %v288, %v288
        %v312 = vmul.f32 %v289, %v289
        %v313 = vmul.f32 %v290, %v290
        %v314 = vadd.f32 %v306, %v310
        %v315 = vadd.f32 %v307, %v311
        %v316 = vadd.f32 %v308, %v312
        %v317 = vadd.f32 %v309, %v313
        %v318 = vmul.f32 %v302, %v302
        %v319 = vmul.f32 %v303, %v303
        %v320 = vmul.f32 %v304, %v304
        %v321 = vmul.f32 %v305, %v305
        %v322 = vadd.f32 %v314, %v318
        %v323 = vadd.f32 %v315, %v319
        %v324 = vadd.f32 %v316, %v320
        %v325 = vadd.f32 %v317, %v321
        %v326 = vadd.f32 %v322, 1e-12
        %v327 = vadd.f32 %v323, 1e-12
        %v328 = vadd.f32 %v324, 1e-12
        %v329 = vadd.f32 %v325, 1e-12
        %v330 = vrsqrt.pop %v326
        %v331 = vrsqrt.pop %v327
        %v332 = vrsqrt.pop %v328
        %v333 = vrsqrt.pop %v329
        %v334 = vmul.f32 %v326, 0.5
        %v335 = vmul.f32 %v327, 0.5
        %v336 = vmul.f32 %v328, 0.5
        %v337 = vmul.f32 %v329, 0.5
        %v338 = vmul.f32 %v334, %v330
        %v339 = vmul.f32 %v335, %v331
        %v340 = vmul.f32 %v336, %v332
        %v341 = vmul.f32 %v337, %v333
        %v342 = vmul.f32 %v338, %v330
        %v343 = vmul.f32 %v339, %v331
        %v344 = vmul.f32 %v340, %v332
        %v345 = vmul.f32 %v341, %v333
        %v346 = vsub.f32 1.5, %v342
        %v347 = vsub.f32 1.5, %v343
        %v348 = vsub.f32 1.5, %v344
        %v349 = vsub.f32 1.5, %v345
        %v350 = vmul.f32 %v330, %v346
        %v351 = vmul.f32 %v331, %v347
        %v352 = vmul.f32 %v332, %v348
        %v353 = vmul.f32 %v333, %v349
        %v354 = vadd.f32 %v350, %v232
        %v355 = vadd.f32 %v351, %v232
        %v356 = vadd.f32 %v352, %v239
        %v357 = vadd.f32 %v353, %v239
        %v358 = vrot.slane %v354, 4
        %v359 = vmax.f32 %v354, %v358
        %v360 = vrot.slane %v359, 2
        %v361 = vmax.f32 %v359, %v360
        %v362 = vrot.slane %v361, 1
        %v363 = vmax.f32 %v361, %v362
        %v364 = vrot.slane %v355, 4
        %v365 = vmax.f32 %v355, %v364
        %v366 = vrot.slane %v365, 2
        %v367 = vmax.f32 %v365, %v366
        %v368 = vrot.slane %v367, 1
        %v369 = vmax.f32 %v367, %v368
        %v370 = vrot.slane %v356, 4
        %v371 = vmax.f32 %v356, %v370
        %v372 = vrot.slane %v371, 2
        %v373 = vmax.f32 %v371, %v372
        %v374 = vrot.slane %v373, 1
        %v375 = vmax.f32 %v373, %v374
        %v376 = vrot.slane %v357, 4
        %v377 = vmax.f32 %v357, %v376
        %v378 = vrot.slane %v377, 2
        %v379 = vmax.f32 %v377, %v378
        %v380 = vrot.slane %v379, 1
        %v381 = vmax.f32 %v379, %v380
        %v382 = vsub.f32 %v354, %v363
        %v383 = vsub.f32 %v355, %v369
        %v384 = vsub.f32 %v356, %v375
        %v385 = vsub.f32 %v357, %v381
        %v386 = vmul.f32 %v382, 1.442695
        %v387 = vpow.pop %v386
        %v388 = vmul.f32 %v383, 1.442695
        %v389 = vpow.pop %v388
        %v390 = vmul.f32 %v384, 1.442695
        %v391 = vpow.pop %v390
        %v392 = vmul.f32 %v385, 1.442695
        %v393 = vpow.pop %v392
        %v394 = vmul.f32 %v387, %v248
        %v395 = vmul.f32 %v389, %v248
        %v396 = vmul.f32 %v391, %v255
        %v397 = vmul.f32 %v393, %v255
        %v398 = vrot.slane %v394, 4
        %v399 = vadd.f32 %v394, %v398
        %v400 = vrot.slane %v399, 2
        %v401 = vadd.f32 %v399, %v400
        %v402 = vrot.slane %v401, 1
        %v403 = vadd.f32 %v401, %v402
        %v404 = vrot.slane %v395, 4
        %v405 = vadd.f32 %v395, %v404
        %v406 = vrot.slane %v405, 2
        %v407 = vadd.f32 %v405, %v406
        %v408 = vrot.slane %v407, 1
        %v409 = vadd.f32 %v407, %v408
        %v410 = vrot.slane %v396, 4
        %v411 = vadd.f32 %v396, %v410
        %v412 = vrot.slane %v411, 2
        %v413 = vadd.f32 %v411, %v412
        %v414 = vrot.slane %v413, 1
        %v415 = vadd.f32 %v413, %v414
        %v416 = vrot.slane %v397, 4
        %v417 = vadd.f32 %v397, %v416
        %v418 = vrot.slane %v417, 2
        %v419 = vadd.f32 %v417, %v418
        %v420 = vrot.slane %v419, 1
        %v421 = vadd.f32 %v419, %v420
        %v422 = vrot.slane %v387, 4
        %v423 = vadd.f32 %v387, %v422
        %v424 = vrot.slane %v423, 2
        %v425 = vadd.f32 %v423, %v424
        %v426 = vrot.slane %v425, 1
        %v427 = vadd.f32 %v425, %v426
        %v428 = vrot.slane %v389, 4
        %v429 = vadd.f32 %v389, %v428
        %v430 = vrot.slane %v429, 2
        %v431 = vadd.f32 %v429, %v430
        %v432 = vrot.slane %v431, 1
        %v433 = vadd.f32 %v431, %v432
        %v434 = vrot.slane %v391, 4
        %v435 = vadd.f32 %v391, %v434
        %v436 = vrot.slane %v435, 2
        %v437 = vadd.f32 %v435, %v436
        %v438 = vrot.slane %v437, 1
        %v439 = vadd.f32 %v437, %v438
        %v440 = vrot.slane %v393, 4
        %v441 = vadd.f32 %v393, %v440
        %v442 = vrot.slane %v441, 2
        %v443 = vadd.f32 %v441, %v442
        %v444 = vrot.slane %v443, 1
        %v445 = vadd.f32 %v443, %v444
        %v446 = vrcp.pop %v427
        %v447 = vrcp.pop %v433
        %v448 = vrcp.pop %v439
        %v449 = vrcp.pop %v445
        %v450 = vmul.f32 %v427, %v446
        %v451 = vmul.f32 %v433, %v447
        %v452 = vmul.f32 %v439, %v448
        %v453 = vmul.f32 %v445, %v449
        %v454 = vsub.f32 2.0, %v450
        %v455 = vsub.f32 2.0, %v451
        %v456 = vsub.f32 2.0, %v452
        %v457 = vsub.f32 2.0, %v453
        %v458 = vmul.f32 %v446, %v454
        %v459 = vmul.f32 %v447, %v455
        %v460 = vmul.f32 %v448, %v456
        %v461 = vmul.f32 %v449, %v457
        %v462 = vmul.f32 %v403, %v458
        %v463 = vmul.f32 %v409, %v459
        %v464 = vmul.f32 %v415, %v460
        %v465 = vmul.f32 %v421, %v461
        %v470 = vcombine.low %v462, %v463
        %v472 = vunpack.c.l.s4 1983009808
        %v473 = vunpack.c.0.s8 %v472
        %v474 = vlaneseq
        %v475 = vshrl.u32 %v474, 7
        %v476 = vsub.s32 %v473, %v475
        %v477 = vrot.slane %v470, %v476
        %v478 = vcombine.low %v464, %v465
        %v480 = vunpack.c.l.s4 1983009808
        %v481 = vunpack.c.0.s8 %v480
        %v482 = vlaneseq
        %v483 = vshrl.u32 %v482, 7
        %v484 = vsub.s32 %v481, %v483
        %v485 = vrot.slane %v478, %v484
        %vm486 = vcmask 1044484
        %v487 = vsel %vm486, %v477, %v477
        %vm488 = vcmask 1046534
        %v489 = vsel %vm488, %v477, %v487
        %v490 = vrot.slane %v485, 7
        %vm491 = vcmask 1041409
        %v492 = vsel %vm491, %v490, %v489
        %vm493 = vcmask 1043459
        %v494 = vsel %vm493, %v490, %v492
        %vm495 = vcmask 1045509
        %v496 = vsel %vm495, %v490, %v494
        %vm497 = vcmask 1047559
        %v498 = vsel %vm497, %v490, %v496
        %500 = vst [vmem:[%s174] sm:$0xf] %v498
        %s501 = sand.u32 %s75, 1
        %s502 = scalar_lea.sflag [#allocation4], %s501
        %s503 = sand.u32 %s75, 1
        %s504 = smul.addr %s503, 4
        %s505 = scalar_lea.vmem [#allocation7], %s504
        // Predicated region
        $region37: #{tpu_custom_call.1} parent=27 // pred_check
          %p506 = pneg %p85
        $region38: #{tpu_custom_call.1} parent=27 // pred_check_branch
          %508 = sbr.rel (%p506) target = $region40
        $region39: #{tpu_custom_call.1} parent=27 // pred_region
          %s509 = smul.u32 2, %s20
          %s511 = ssub.s32 64, 64
          %512 = vsyncadd %s502, %s511
          %s513 = smul.addr %s509, 32
          %s514 = scalar_lea.hbm %s2, %s513
          %s516 = sshll.u32 %s505, 4
          %s517 = int_to_ptr.vmem [resolvable:$true] %s516
          %519 = dma.vmem_to_hbm [thread:$0]  %s517, 64, %s514, %s502
        $region40: #{tpu_custom_call.1} parent=27 // pred_fallthru
          _
      $region28: #{tpu_custom_call.1} parent=5 // pred_fallthru
        _
      %p520 = scmp.le.s32.totalorder 2, %s15
      // Predicated region
      $region41: #{tpu_custom_call.1} parent=5 // pred_check
        %p521 = pneg %p520
      $region42: #{tpu_custom_call.1} parent=5 // pred_check_branch
        %523 = sbr.rel (%p521) target = $region44
      $region43: #{tpu_custom_call.1} parent=5 // pred_region
        %s524 = ssub.s32 %s15, 2
        // Predicated region
        $region45: #{tpu_custom_call.1} parent=43 // pred_check
          %p525 = pneg %p91
        $region46: #{tpu_custom_call.1} parent=43 // pred_check_branch
          %527 = sbr.rel (%p525) target = $region48
        $region47: #{tpu_custom_call.1} parent=43 // pred_region
          %s528 = sand.u32 %s76, 1
          %s529 = scalar_lea.sflag [#allocation4], %s528
          %s530 = sand.u32 %s76, 1
          %s531 = smul.addr %s530, 4
          %s532 = scalar_lea.vmem [#allocation7], %s531
          %533 = dma.done %s529, 64
        $region48: #{tpu_custom_call.1} parent=43 // pred_fallthru
          _
      $region44: #{tpu_custom_call.1} parent=5 // pred_fallthru
        _
    $region6: #{tpu_custom_call.1} parent=1 // loop_footer
      %s19 = sadd.s32 1, %s15
    $region7: #{tpu_custom_call.1} parent=1 // loop_footer_branch
      %14 = sbr.rel target = $region3
    $region8: #{tpu_custom_call.1} parent=1 // loop_exit
      _
    %534 = vsyncpa [#allocation3], 1
    %s535 = scalar_lea.sflag [#allocation3], 1
    %536 = vsyncpa %s535, 1
    %537 = vsyncpa [#allocation6], 1
    %538 = vsyncpa [#allocation4], 1
    %s539 = scalar_lea.sflag [#allocation4], 1
    %540 = vsyncpa %s539, 1

</llo_original>
